<compile_context>
chip_gen: v7x
topology: tpu7x:2x2x1
jax: 0.10.0
libtpu: 0.0.40
codegen_flags: <defaults>
</compile_context>

<pallas_src>
import functools

import jax
import jax.numpy as jnp
from jax.experimental import pallas as pl
from jax.experimental.pallas import tpu as pltpu

LANE = 128
SUBLANE = 16  # safe for both f32 (8-row) and bf16 (16-row) sublane packing


def _round_up(x, m):
    return pl.cdiv(x, m) * m


# ----------------------------------------------------------------------------
# Pallas kernel: one batch-group (G*Tp token rows) per grid step.
#   x_ref   : (G*Tp, Cpp)  patch slab (compute dtype), streamed per step
#   w_ref   : (Cpp, Wf)    fused RHS  [w1 | w1@w2 | 0]           (resident)
#   add_ref : (Tp, Wf)     fused bias [b1 | (pos+b1)@w2+b2 | 0]  (resident, f32)
#   out_ref : (G*Tp, Wf)   fused f32 output (lane-dense, width 128)
# ----------------------------------------------------------------------------
def frame_encoder_kernel(x_ref, w_ref, add_ref, out_ref, *, G, Tp):
    x = x_ref[...]
    h = jnp.dot(x, w_ref[...], preferred_element_type=jnp.float32)  # (G*Tp, Wf) f32
    Wf = h.shape[-1]
    # Broadcast the per-token additive slab across the G batches of this group.
    # Tp is a sublane multiple, so the split/merge reshapes stay tile-aligned.
    h = (h.reshape(G, Tp, Wf) + add_ref[...][None]).reshape(G * Tp, Wf)
    out_ref[...] = h.astype(out_ref.dtype)


def frame_encoder_forward(images, w1, b1, pos, w2, b2, *, patch,
                          compute_dtype=jnp.bfloat16, target_rows=4096):
    """images: (B, C, H, W) float32 NCHW. Returns dict like FrameEncoder.forward."""
    B, C, H, W = images.shape
    P = patch
    Hp, Wp = H // P, W // P
    T = Hp * Wp
    Cpp, D = w1.shape
    D_out = w2.shape[1]

    Tp = _round_up(T, SUBLANE)           # token rows padded to sublane multiple
    Wf = _round_up(D + D_out, LANE)      # fused lane-dense output width

    # --- patchify exactly like Conv2d(kernel=P, stride=P) + 'b c h w -> b (h w) c' ---
    # Cast first so the XLA transpose pass moves bf16, not f32.
    # TODO(synk): fold this NCHW -> patch-major rearrangement into the kernel via manual
    # strided DMA (memory_space=pl.ANY + make_async_copy) to drop the extra HBM pass.
    x = images.astype(compute_dtype)
    x = x.reshape(B, C, Hp, P, Wp, P).transpose(0, 2, 4, 1, 3, 5).reshape(B, T, Cpp)
    if Tp != T:
        x = jnp.pad(x, ((0, 0), (0, Tp - T), (0, 0)))

    # --- batch grouping: no divisibility requirement, >=2 groups when B >= 2 ---
    G_target = max(1, target_rows // Tp)
    min_groups = min(B, 4)                      # >=2 grid steps for megacore / v7x
    G = max(1, min(B, G_target, -(-B // min_groups)))
    num_groups = -(-B // G)
    B_pad = num_groups * G
    if B_pad != B:
        x = jnp.pad(x, ((0, B_pad - B), (0, 0), (0, 0)))
    rows = G * Tp
    patches = x.reshape(B_pad * Tp, Cpp)

    # --- fuse parameters: one (Cpp, Wf) RHS and one (Tp, Wf) additive slab ---
    w1f = w1.astype(jnp.float32)
    w2f = w2.astype(jnp.float32)
    b1f = b1.astype(jnp.float32).reshape(1, D)
    b2f = b2.astype(jnp.float32).reshape(1, D_out)
    posf = pos.astype(jnp.float32)
    if Tp != T:
        posf = jnp.pad(posf, ((0, Tp - T), (0, 0)))

    w12 = w1f @ w2f                              # (Cpp, D_out)
    pos2 = (posf + b1f) @ w2f + b2f              # (Tp, D_out), f32 post-accum add

    w_fused = jnp.zeros((Cpp, Wf), jnp.float32)
    w_fused = w_fused.at[:, :D].set(w1f).at[:, D:D + D_out].set(w12)
    w_fused = w_fused.astype(compute_dtype)

    add_fused = jnp.zeros((Tp, Wf), jnp.float32)
    add_fused = add_fused.at[:, :D].set(jnp.broadcast_to(b1f, (Tp, D)))
    add_fused = add_fused.at[:, D:D + D_out].set(pos2)

    # --- cost estimate (advisory; resident operands counted once) ---
    itemsize = jnp.dtype(compute_dtype).itemsize
    flops = 2 * (B_pad * Tp) * Cpp * Wf
    bytes_accessed = (
        B_pad * Tp * Cpp * itemsize        # streamed patch slab
        + Cpp * Wf * itemsize              # fused weights (resident)
        + Tp * Wf * 4                      # fused additive slab (resident)
        + B_pad * Tp * Wf * 4              # single fused f32 output
    )

    kernel = functools.partial(frame_encoder_kernel, G=G, Tp=Tp)
    fused = pl.pallas_call(
        kernel,
        out_shape=jax.ShapeDtypeStruct((B_pad * Tp, Wf), jnp.float32),
        grid=(num_groups,),
        in_specs=[
            pl.BlockSpec((rows, Cpp), lambda g: (g, 0)),   # streamed patch rows
            pl.BlockSpec((Cpp, Wf), lambda g: (0, 0)),     # resident fused weights
            pl.BlockSpec((Tp, Wf), lambda g: (0, 0)),      # resident fused bias/pos
        ],
        out_specs=pl.BlockSpec((rows, Wf), lambda g: (g, 0)),
        compiler_params=pltpu.CompilerParams(
            dimension_semantics=("parallel",),
            vmem_limit_bytes=48 * 1024 * 1024,
        ),
        cost_estimate=pl.CostEstimate(
            flops=flops, transcendentals=0, bytes_accessed=bytes_accessed),
    )(patches, w_fused, add_fused)

    # strip batch / token padding, split the fused lanes back into the two outputs
    fused = fused.reshape(B_pad, Tp, Wf)[:B, :T, :]
    backbone = fused[..., :D]
    feats = fused[..., D:D + D_out]
    return {"features": feats, "backbone_features": backbone}


# ----------------------------------------------------------------------------
# Pure-JAX f32 reference (sanity check).
# ----------------------------------------------------------------------------
def frame_encoder_reference(images, w1, b1, pos, w2, b2, *, patch):
    B, C, H, W = images.shape
    P = patch
    Hp, Wp = H // P, W // P
    T = Hp * Wp
    x = images.reshape(B, C, Hp, P, Wp, P).transpose(0, 2, 4, 1, 3, 5)
    patches = x.reshape(B, T, -1)
    backbone = patches @ w1 + b1                   # (B, T, D)
    feats = (backbone + pos[None]) @ w2 + b2       # (B, T, D_out)
    return {"features": feats, "backbone_features": backbone}


if __name__ == "__main__":
    B, C, H, W = 2, 4, 16, 16
    P = 4
    Hp, Wp = H // P, W // P
    T = Hp * Wp              # 16 tokens
    D = 32                   # backbone feature dim
    D_out = 32               # output_transform dim
    Cpp = C * P * P          # 64

    key = jax.random.PRNGKey(0)
    k_img, k_w1, k_b1, k_pos, k_w2, k_b2 = jax.random.split(key, 6)

    images = jax.random.normal(k_img, (B, C, H, W), dtype=jnp.float32)
    w1 = jax.random.normal(k_w1, (Cpp, D), dtype=jnp.float32) * 0.05
    b1 = jax.random.normal(k_b1, (D,), dtype=jnp.float32) * 0.01
    pos = jax.random.normal(k_pos, (T, D), dtype=jnp.float32) * 0.02
    w2 = jax.random.normal(k_w2, (D, D_out), dtype=jnp.float32) * 0.1
    b2 = jax.random.normal(k_b2, (D_out,), dtype=jnp.float32) * 0.01

    out = frame_encoder_forward(images, w1, b1, pos, w2, b2, patch=P,
                                compute_dtype=jnp.bfloat16)
    jax.block_until_ready(out)

    ref = frame_encoder_reference(images, w1, b1, pos, w2, b2, patch=P)
    assert out["features"].shape == (B, T, D_out)
    assert out["backbone_features"].shape == (B, T, D)
    # bf16 MXU operands with f32 accumulation -> tolerance sized for bf16 rounding.
    assert jnp.allclose(out["backbone_features"], ref["backbone_features"],
                        atol=3e-2, rtol=3e-2)
    assert jnp.allclose(out["features"], ref["features"], atol=3e-2, rtol=3e-2)

    print("KERNEL_OK")
</pallas_src>

<mosaic_0001>
module attributes {stable_mosaic.version = 11 : i64} {
  func.func @frame_encoder_kernel(%arg0: i32, %arg1: memref<16x64xbf16, #tpu.memory_space<vmem>>, %arg2: memref<64x128xbf16, #tpu.memory_space<vmem>>, %arg3: memref<16x128xf32, #tpu.memory_space<vmem>>, %arg4: memref<16x128xf32, #tpu.memory_space<vmem>>) attributes {dimension_semantics = [#tpu.dimension_semantics<parallel>], iteration_bounds = array<i64: 2>, scalar_prefetch = 0 : i64, scratch_operands = 0 : i64, tpu.core_type = #tpu.core_type<tc>, window_params = [{transform_indices = @transform_0, window_bounds = array<i64: 16, 64>}, {pipeline_mode = #tpu.pipeline_mode<synchronous>, transform_indices = @transform_1, window_bounds = array<i64: 64, 128>}, {pipeline_mode = #tpu.pipeline_mode<synchronous>, transform_indices = @transform_2, window_bounds = array<i64: 16, 128>}, {transform_indices = @transform_3, window_bounds = array<i64: 16, 128>}]} {
    %c0 = arith.constant 0 : index
    %c0_0 = arith.constant 0 : index
    %0 = vector.load %arg1[%c0, %c0_0] : memref<16x64xbf16, #tpu.memory_space<vmem>>, vector<16x64xbf16>
    %c0_1 = arith.constant 0 : index
    %c0_2 = arith.constant 0 : index
    %1 = vector.load %arg2[%c0_1, %c0_2] : memref<64x128xbf16, #tpu.memory_space<vmem>>, vector<64x128xbf16>
    %cst = arith.constant dense<0.000000e+00> : vector<16x128xf32>
    %2 = tpu.matmul %0, %1, %cst {dimension_numbers = #tpu.dot_dimension_numbers<[1], [0], [0], [1], [0, 0, 1, 1], [], []>} : vector<16x64xbf16>, vector<64x128xbf16>, vector<16x128xf32> -> vector<16x128xf32>
    %3 = vector.shape_cast %2 : vector<16x128xf32> to vector<1x16x128xf32>
    %c0_3 = arith.constant 0 : index
    %c0_4 = arith.constant 0 : index
    %4 = vector.load %arg3[%c0_3, %c0_4] : memref<16x128xf32, #tpu.memory_space<vmem>>, vector<16x128xf32>
    %5 = vector.shape_cast %4 : vector<16x128xf32> to vector<1x16x128xf32>
    %6 = arith.addf %3, %5 : vector<1x16x128xf32>
    %7 = vector.shape_cast %6 : vector<1x16x128xf32> to vector<16x128xf32>
    %c0_5 = arith.constant 0 : index
    %c0_6 = arith.constant 0 : index
    %8 = vector.load %arg4[%c0_5, %c0_6] : memref<16x128xf32, #tpu.memory_space<vmem>>, vector<16x128xf32>
    tpu.vector_store %arg4[%c0_5, %c0_6], %7 {strides = array<i32>} : memref<16x128xf32, #tpu.memory_space<vmem>>, vector<16x128xf32>,
    return
  }
  func.func @transform_0(%arg0: i32) -> (i32, i32) {
    %c0_i32 = arith.constant 0 : i32
    %c0_i32_0 = arith.constant 0 : i32
    return %arg0, %c0_i32 : i32, i32
  }
  func.func @transform_1(%arg0: i32) -> (i32, i32) {
    %c0_i32 = arith.constant 0 : i32
    %c0_i32_0 = arith.constant 0 : i32
    %c0_i32_1 = arith.constant 0 : i32
    return %c0_i32, %c0_i32_0 : i32, i32
  }
  func.func @transform_2(%arg0: i32) -> (i32, i32) {
    %c0_i32 = arith.constant 0 : i32
    %c0_i32_0 = arith.constant 0 : i32
    %c0_i32_1 = arith.constant 0 : i32
    return %c0_i32, %c0_i32_0 : i32, i32
  }
  func.func @transform_3(%arg0: i32) -> (i32, i32) {
    %c0_i32 = arith.constant 0 : i32
    %c0_i32_0 = arith.constant 0 : i32
    return %arg0, %c0_i32 : i32, i32
  }
}

</mosaic_0001>

<llo_original>
// kernel: tpu_custom_call.1
$region0: #{tpu_custom_call.1}
  #allocation0 [shape = 'u32[]', space=smem, size = 0x4, offset = 0x4, fixed_abs, tag = 'smem constant byte address 0x4 - core index']
  #allocation1 [shape = 'u32[144,128]{1,0:T(1,128)}', space=vmem, size = 0x12000, scoped, tag = 'internal scratch']
  %s0 = inlined_call_operand.hbm [shape: bf16[32,64], index: 0, kind: input, shape index: {}]
  %s1 = inlined_call_operand.hbm [shape: bf16[64,128], index: 1, kind: input, shape index: {}]
  %s2 = inlined_call_operand.hbm [shape: f32[16,128], index: 2, kind: input, shape index: {}]
  %s3 = inlined_call_operand.hbm [shape: f32[32,128], index: 3, kind: output, shape index: {}]
  %s4 = sld [smem:[#allocation0]]
  $region57: #{tpu_custom_call.1} parent=0
    _
  %s6 = ssub.s32 1, %s4
  %s7 = scalar_select 0, %s6, %s4
  $region1: #{tpu_custom_call.1} parent=0
    #allocation2 [shape = 'u8[8192]{0}', space=vmem, size = 0x2000, scoped, tag = 'input window, operand 0']
    #allocation3 [shape = 's32[2]{0}', space=sflag, size = 0x8, scoped, tag = 'scoped memory for tpu_custom_call.1']
    #allocation4 [shape = 's32[2]{0}', space=sflag, size = 0x8, scoped, tag = 'scoped memory for tpu_custom_call.1']
    #allocation5 [shape = 'u8[16384]{0}', space=vmem, size = 0x4000, scoped, tag = 'input window, operand 1, single buffered']
    #allocation6 [shape = 's32[1]{0}', space=sflag, size = 0x4, scoped, tag = 'scoped memory for tpu_custom_call.1']
    #allocation7 [shape = 'u8[8192]{0}', space=vmem, size = 0x2000, scoped, tag = 'input window, operand 2, single buffered']
    #allocation8 [shape = 'u8[16384]{0}', space=vmem, size = 0x4000, scoped, tag = 'output window, operand 0']
    %8 = vsyncpa [#allocation3], 0
    %s9 = scalar_lea.sflag [#allocation3], 1
    %10 = vsyncpa %s9, 0
    %11 = vsyncpa [#allocation6], 0
    %12 = vsyncpa [#allocation4], 0
    %s13 = scalar_lea.sflag [#allocation4], 1
    %14 = vsyncpa %s13, 0
    loop: start=0, step=1, limit=4
    $region2: #{tpu_custom_call.1} parent=1 // loop_pre_header
      _
    $region3: #{tpu_custom_call.1} parent=1 // loop_header
      %s16 = sphi 0, %s20
      %p17 = scmp.ge.s32.totalorder %s16, 4
      %s26 = sphi 0, %s28
      %s29 = sphi 0, %s26
      %s30 = sphi 0, %s29
      %s46 = sphi 0, %s30
      %s50 = sphi 0, %s50
      %s52 = sphi 0, %s50
      %s53 = sphi 0, %s52
      %s67 = sphi 0, %s53
      %s71 = sphi 0, %s71
      %s73 = sphi 0, %s71
      %s74 = sphi 0, %s73
      %s88 = sphi 0, %s74
      %s94 = sphi 0, %s96
      %s97 = sphi 0, %s94
      %s98 = sphi 0, %s97
      %s114 = sphi 0, %s98
    $region4: #{tpu_custom_call.1} parent=1 // loop_header_branch
      %19 = sbr.rel (%p17) target = $region8
    $region5: #{tpu_custom_call.1} parent=1 // loop_body
      %s21 = ssub.s32 %s16, 1
      %s22 = ssub.s32 %s16, 2
      %s23 = sadd.s32 %s16, 1
      %s24 = ssub.s32 %s16, %s23
      %p25 = scmp.eq.s32.totalorder %s24, 0
      %s27 = sadd.s32 %s26, 1
      %s28 = scalar_select %p25, %s26, %s27
      %p31 = pneg %p25
      %p32 = scmp.eq.s32.totalorder %s16, 1
      %p33 = por %p31, %p32
      %p34 = scmp.ne.s32.totalorder %s26, %s29
      %p35 = scmp.eq.s32.totalorder %s16, 0
      %p36 = por %p34, %p35
      %p37 = scmp.ne.s32.totalorder %s26, %s29
      %p38 = scmp.eq.s32.totalorder %s21, 1
      %p39 = por %p37, %p38
      %p40 = scmp.ne.s32.totalorder %s29, %s30
      %p41 = scmp.eq.s32.totalorder %s21, 0
      %p42 = por %p40, %p41
      %p43 = scmp.ne.s32.totalorder %s29, %s30
      %p44 = scmp.eq.s32.totalorder %s22, 1
      %p45 = por %p43, %p44
      %p47 = scmp.ne.s32.totalorder %s30, %s46
      %p48 = scmp.eq.s32.totalorder %s22, 0
      %p49 = por %p47, %p48
      %s51 = sadd.s32 %s50, 1
      %p54 = scmp.eq.s32.totalorder %s16, 1
      %p55 = scmp.ne.s32.totalorder %s50, %s52
      %p56 = scmp.eq.s32.totalorder %s16, 0
      %p57 = por %p55, %p56
      %p58 = scmp.ne.s32.totalorder %s50, %s52
      %p59 = scmp.eq.s32.totalorder %s21, 1
      %p60 = por %p58, %p59
      %p61 = scmp.ne.s32.totalorder %s52, %s53
      %p62 = scmp.eq.s32.totalorder %s21, 0
      %p63 = por %p61, %p62
      %p64 = scmp.ne.s32.totalorder %s52, %s53
      %p65 = scmp.eq.s32.totalorder %s22, 1
      %p66 = por %p64, %p65
      %p68 = scmp.ne.s32.totalorder %s53, %s67
      %p69 = scmp.eq.s32.totalorder %s22, 0
      %p70 = por %p68, %p69
      %s72 = sadd.s32 %s71, 1
      %p75 = scmp.eq.s32.totalorder %s16, 1
      %p76 = scmp.ne.s32.totalorder %s71, %s73
      %p77 = scmp.eq.s32.totalorder %s16, 0
      %p78 = por %p76, %p77
      %p79 = scmp.ne.s32.totalorder %s71, %s73
      %p80 = scmp.eq.s32.totalorder %s21, 1
      %p81 = por %p79, %p80
      %p82 = scmp.ne.s32.totalorder %s73, %s74
      %p83 = scmp.eq.s32.totalorder %s21, 0
      %p84 = por %p82, %p83
      %p85 = scmp.ne.s32.totalorder %s73, %s74
      %p86 = scmp.eq.s32.totalorder %s22, 1
      %p87 = por %p85, %p86
      %p89 = scmp.ne.s32.totalorder %s74, %s88
      %p90 = scmp.eq.s32.totalorder %s22, 0
      %p91 = por %p89, %p90
      %s92 = ssub.s32 %s16, %s23
      %p93 = scmp.eq.s32.totalorder %s92, 0
      %s95 = sadd.s32 %s94, 1
      %s96 = scalar_select %p93, %s94, %s95
      %p99 = pneg %p93
      %p100 = scmp.eq.s32.totalorder %s16, 1
      %p101 = por %p99, %p100
      %p102 = scmp.ne.s32.totalorder %s94, %s97
      %p103 = scmp.eq.s32.totalorder %s16, 0
      %p104 = por %p102, %p103
      %p105 = scmp.ne.s32.totalorder %s94, %s97
      %p106 = scmp.eq.s32.totalorder %s21, 1
      %p107 = por %p105, %p106
      %p108 = scmp.ne.s32.totalorder %s97, %s98
      %p109 = scmp.eq.s32.totalorder %s21, 0
      %p110 = por %p108, %p109
      %p111 = scmp.ne.s32.totalorder %s97, %s98
      %p112 = scmp.eq.s32.totalorder %s22, 1
      %p113 = por %p111, %p112
      %p115 = scmp.ne.s32.totalorder %s98, %s114
      %p116 = scmp.eq.s32.totalorder %s22, 0
      %p117 = por %p115, %p116
      %p118 = scmp.le.s32.totalorder 1, %s16
      %p119 = scmp.lt.s32.totalorder %s16, 3
      %p120 = pnand %p118, %p119
      %p121 = pneg %p120
      // Predicated region
      $region9: #{tpu_custom_call.1} parent=5 // pred_check
        _
      $region10: #{tpu_custom_call.1} parent=5 // pred_check_branch
        %123 = sbr.rel (%p120) target = $region12
      $region11: #{tpu_custom_call.1} parent=5 // pred_region
        %s124 = ssub.s32 %s16, 1
        // Predicated region
        $region13: #{tpu_custom_call.1} parent=11 // pred_check
          %p125 = pneg %p63
        $region14: #{tpu_custom_call.1} parent=11 // pred_check_branch
          %127 = sbr.rel (%p125) target = $region16
        $region15: #{tpu_custom_call.1} parent=11 // pred_region
          %s129 = ssub.s32 512, 512
          %130 = vsyncadd [#allocation6], %s129
          %s131 = sshll.u32 [#allocation5], 4
          %s132 = int_to_ptr.vmem [resolvable:$true] %s131
          %137 = dma.hbm_to_vmem [thread:$0]  %s1, 512, %s132, [#allocation6], 64, 64, 4
        $region16: #{tpu_custom_call.1} parent=11 // pred_fallthru
          _
        // Predicated region
        $region17: #{tpu_custom_call.1} parent=11 // pred_check
          %p138 = pneg %p84
        $region18: #{tpu_custom_call.1} parent=11 // pred_check_branch
          %140 = sbr.rel (%p138) target = $region20
        $region19: #{tpu_custom_call.1} parent=11 // pred_region
          %s142 = ssub.s32 256, 256
          %143 = vsyncadd [#allocation6], %s142
          %s144 = sshll.u32 [#allocation7], 4
          %s145 = int_to_ptr.vmem [resolvable:$true] %s144
          %150 = dma.hbm_to_vmem [thread:$0]  %s2, 256, %s145, [#allocation6], 128, 128, 8
        $region20: #{tpu_custom_call.1} parent=11 // pred_fallthru
          _
      $region12: #{tpu_custom_call.1} parent=5 // pred_fallthru
        _
      %p151 = scmp.lt.s32.totalorder %s16, 2
      // Predicated region
      $region21: #{tpu_custom_call.1} parent=5 // pred_check
        %p152 = pneg %p151
      $region22: #{tpu_custom_call.1} parent=5 // pred_check_branch
        %154 = sbr.rel (%p152) target = $region24
      $region23: #{tpu_custom_call.1} parent=5 // pred_region
        // Predicated region
        $region25: #{tpu_custom_call.1} parent=23 // pred_check
          %p155 = pneg %p36
        $region26: #{tpu_custom_call.1} parent=23 // pred_check_branch
          %157 = sbr.rel (%p155) target = $region28
        $region27: #{tpu_custom_call.1} parent=23 // pred_region
          %s158 = sand.u32 %s26, 1
          %s159 = scalar_lea.sflag [#allocation3], %s158
          %s160 = sand.u32 %s26, 1
          %s161 = smul.addr %s160, 8
          %s162 = scalar_lea.vmem [#allocation2], %s161
          %s163 = smul.u32 2, %s16
          %s165 = ssub.s32 128, 128
          %166 = vsyncadd %s159, %s165
          %s167 = smul.addr %s163, 64
          %s168 = scalar_lea.hbm %s0, %s167
          %s169 = sshll.u32 %s162, 4
          %s170 = int_to_ptr.vmem [resolvable:$true] %s169
          %175 = dma.hbm_to_vmem [thread:$0]  %s168, 128, %s170, %s159, 64, 64, 4
        $region28: #{tpu_custom_call.1} parent=23 // pred_fallthru
          _
      $region24: #{tpu_custom_call.1} parent=5 // pred_fallthru
        _
      %p176 = scmp.le.s32.totalorder 1, %s16
      %p177 = scmp.lt.s32.totalorder %s16, 3
      %p178 = pnand %p176, %p177
      %p179 = pneg %p178
      // Predicated region
      $region29: #{tpu_custom_call.1} parent=5 // pred_check
        _
      $region30: #{tpu_custom_call.1} parent=5 // pred_check_branch
        %181 = sbr.rel (%p178) target = $region32
      $region31: #{tpu_custom_call.1} parent=5 // pred_region
        %s182 = ssub.s32 %s16, 1
        %s183 = sand.u32 %s29, 1
        %s184 = scalar_lea.sflag [#allocation3], %s183
        %s185 = sand.u32 %s29, 1
        %s186 = smul.addr %s185, 8
        %s187 = scalar_lea.vmem [#allocation2], %s186
        // Predicated region
        $region33: #{tpu_custom_call.1} parent=31 // pred_check
          %p188 = pneg %p42
        $region34: #{tpu_custom_call.1} parent=31 // pred_check_branch
          %190 = sbr.rel (%p188) target = $region36
        $region35: #{tpu_custom_call.1} parent=31 // pred_region
          %191 = dma.done %s184, 128
        $region36: #{tpu_custom_call.1} parent=31 // pred_fallthru
          _
        // Predicated region
        $region37: #{tpu_custom_call.1} parent=31 // pred_check
          %p192 = pneg %p63
        $region38: #{tpu_custom_call.1} parent=31 // pred_check_branch
          %194 = sbr.rel (%p192) target = $region40
        $region39: #{tpu_custom_call.1} parent=31 // pred_region
          %195 = dma.done [#allocation6], 512
        $region40: #{tpu_custom_call.1} parent=31 // pred_fallthru
          _
        // Predicated region
        $region41: #{tpu_custom_call.1} parent=31 // pred_check
          %p196 = pneg %p84
        $region42: #{tpu_custom_call.1} parent=31 // pred_check_branch
          %198 = sbr.rel (%p196) target = $region44
        $region43: #{tpu_custom_call.1} parent=31 // pred_region
          %199 = dma.done [#allocation6], 256
        $region44: #{tpu_custom_call.1} parent=31 // pred_fallthru
          _
        %s200 = sand.u32 %s29, 1
        %s201 = scalar_lea.sflag [#allocation3], %s200
        %s202 = sand.u32 %s29, 1
        %s203 = smul.addr %s202, 8
        %s204 = scalar_lea.vmem [#allocation2], %s203
        %p205 = pneg %p42
        %p206 = pneg %p39
        %p207 = pneg %p63
        %p208 = pneg %p60
        %p209 = pneg %p84
        %p210 = pneg %p81
        %p211 = pneg %p110
        %p212 = pneg %p107
        %s213 = sand.u32 %s97, 1
        %s214 = scalar_lea.sflag [#allocation4], %s213
        %s215 = sand.u32 %s97, 1
        %s216 = smul.addr %s215, 16
        %s217 = scalar_lea.vmem [#allocation8], %s216
        %s218 = smul.u32 2, %s21
        %s219 = smul.u32 2, %s21
        %v221 = vld [vmem:[%s187] sm:$0xf]
        %v222 = vld [vmem:[%s187 + $0x4] sm:$0xf]
        %v223 = vld [vmem:[#allocation5] sm:$0xf]
        %v224 = vld [vmem:[#allocation5 + $0x4] sm:$0xf]
        %v225 = vld [vmem:[#allocation5 + $0x8] sm:$0xf]
        %v226 = vld [vmem:[#allocation5 + $0xc] sm:$0xf]
        %v227 = vld [vmem:[#allocation5 + $0x10] sm:$0xf]
        %v228 = vld [vmem:[#allocation5 + $0x14] sm:$0xf]
        %v229 = vld [vmem:[#allocation5 + $0x18] sm:$0xf]
        %v230 = vld [vmem:[#allocation5 + $0x1c] sm:$0xf]
        %v233 = vunpack.c.l.b16 %v221
        %v234 = vunpack.c.l.b16 %v222
        %v235 = vpack.c.b16 %v234, %v233
        %v244 = vunpack.c.l.b16 %v223
        %v245 = vunpack.c.l.b16 %v224
        %v246 = vunpack.c.l.b16 %v225
        %v247 = vunpack.c.l.b16 %v226
        %v248 = vunpack.c.l.b16 %v227
        %v249 = vunpack.c.l.b16 %v228
        %v250 = vunpack.c.l.b16 %v229
        %v251 = vunpack.c.l.b16 %v230
        %v252 = vpack.c.b16 %v245, %v244
        %v253 = vpack.c.b16 %v247, %v246
        %v254 = vpack.c.b16 %v249, %v248
        %v255 = vpack.c.b16 %v251, %v250
        %vm260 = vcmask 523264
        %v262 = vsel %vm260, %v235, 0
        %264 = vmatprep.subr.bf16.mxu0 0
        %265 = vmatpush1.bf16.msra.mxu0 %v252
        %266 = vmatprep.subr.bf16.mxu0 0
        %267 = vmatpush1.bf16.msra.mxu0 %v253
        %268 = vmatprep.subr.bf16.mxu0 0
        %269 = vmatpush1.bf16.msra.mxu0 %v254
        %270 = vmatprep.subr.bf16.mxu0 0
        %271 = vmatpush1.bf16.msra.mxu0 %v255
        %272 = vmatprep.subr.bf16.mxu0 0
        %273 = vmatpush1.bf16.msra.mxu0 0
        %274 = vmatprep.subr.bf16.mxu0 0
        %275 = vmatpush1.bf16.msra.mxu0 0
        %276 = vmatprep.subr.bf16.mxu0 0
        %277 = vmatpush1.bf16.msra.mxu0 0
        %278 = vmatprep.subr.bf16.mxu0 0
        %279 = vmatpush1.bf16.msra.mxu0 0
        %280 = vmatprep.subr.bf16.mxu0 0
        %281 = vmatpush1.bf16.msra.mxu0 0
        %282 = vmatprep.subr.bf16.mxu0 0
        %283 = vmatpush1.bf16.msra.mxu0 0
        %284 = vmatprep.subr.bf16.mxu0 0
        %285 = vmatpush1.bf16.msra.mxu0 0
        %286 = vmatprep.subr.bf16.mxu0 0
        %287 = vmatpush1.bf16.msra.mxu0 0
        %288 = vmatprep.subr.bf16.mxu0 0
        %289 = vmatpush1.bf16.msra.mxu0 0
        %290 = vmatprep.subr.bf16.mxu0 0
        %291 = vmatpush1.bf16.msra.mxu0 0
        %292 = vmatprep.subr.bf16.mxu0 0
        %293 = vmatpush1.bf16.msra.mxu0 0
        %294 = vmatprep.subr.bf16.mxu0 0
        %295 = vmatpush1.bf16.msra.mxu0 0
        %296 = vmatprep.mubr.bf16.mxu0 0
        %297 = vmatmul.mubr.bf16.gmra.mrb[0].mxu0 %v262
        %v298 = vpop.f32.mrb[0].mxu0
        %v299 = vadd.f32 0.0, %v298
        %v300 = vpop.f32.mrb[0].mxu0
        %v301 = vpop.f32.mrb[0].mxu0
        %v302 = vadd.f32 0.0, %v301
        %v303 = vpop.f32.mrb[0].mxu0
        %304 = vdwg.mxu0
        %v305 = vld [vmem:[#allocation7] sm:$0xff]
        %v306 = vld [vmem:[#allocation7 + $0x8] sm:$0xff]
        %v307 = vadd.f32 %v299, %v305
        %v308 = vadd.f32 %v302, %v306
        %309 = vst [vmem:[%s217] sm:$0xff] %v307
        %310 = vst [vmem:[%s217 + $0x8] sm:$0xff] %v308
        %s311 = sand.u32 %s97, 1
        %s312 = scalar_lea.sflag [#allocation4], %s311
        %s313 = sand.u32 %s97, 1
        %s314 = smul.addr %s313, 16
        %s315 = scalar_lea.vmem [#allocation8], %s314
        // Predicated region
        $region45: #{tpu_custom_call.1} parent=31 // pred_check
          %p316 = pneg %p107
        $region46: #{tpu_custom_call.1} parent=31 // pred_check_branch
          %318 = sbr.rel (%p316) target = $region48
        $region47: #{tpu_custom_call.1} parent=31 // pred_region
          %s319 = smul.u32 2, %s21
          %s321 = ssub.s32 256, 256
          %322 = vsyncadd %s312, %s321
          %s323 = smul.addr %s319, 128
          %s324 = scalar_lea.hbm %s3, %s323
          %s325 = sshll.u32 %s315, 4
          %s326 = int_to_ptr.vmem [resolvable:$true] %s325
          %331 = dma.vmem_to_hbm [thread:$0]  %s326, 256, %s324, %s312, 128, 128, 8
        $region48: #{tpu_custom_call.1} parent=31 // pred_fallthru
          _
      $region32: #{tpu_custom_call.1} parent=5 // pred_fallthru
        _
      %p332 = scmp.le.s32.totalorder 2, %s16
      // Predicated region
      $region49: #{tpu_custom_call.1} parent=5 // pred_check
        %p333 = pneg %p332
      $region50: #{tpu_custom_call.1} parent=5 // pred_check_branch
        %335 = sbr.rel (%p333) target = $region52
      $region51: #{tpu_custom_call.1} parent=5 // pred_region
        %s336 = ssub.s32 %s16, 2
        // Predicated region
        $region53: #{tpu_custom_call.1} parent=51 // pred_check
          %p337 = pneg %p113
        $region54: #{tpu_custom_call.1} parent=51 // pred_check_branch
          %339 = sbr.rel (%p337) target = $region56
        $region55: #{tpu_custom_call.1} parent=51 // pred_region
          %s340 = sand.u32 %s98, 1
          %s341 = scalar_lea.sflag [#allocation4], %s340
          %s342 = sand.u32 %s98, 1
          %s343 = smul.addr %s342, 16
          %s344 = scalar_lea.vmem [#allocation8], %s343
          %345 = dma.done %s341, 256
        $region56: #{tpu_custom_call.1} parent=51 // pred_fallthru
          _
      $region52: #{tpu_custom_call.1} parent=5 // pred_fallthru
        _
    $region6: #{tpu_custom_call.1} parent=1 // loop_footer
      %s20 = sadd.s32 1, %s16
    $region7: #{tpu_custom_call.1} parent=1 // loop_footer_branch
      %15 = sbr.rel target = $region3
    $region8: #{tpu_custom_call.1} parent=1 // loop_exit
      _
    %346 = vsyncpa [#allocation3], 1
    %s347 = scalar_lea.sflag [#allocation3], 1
    %348 = vsyncpa %s347, 1
    %349 = vsyncpa [#allocation6], 1
    %350 = vsyncpa [#allocation4], 1
    %s351 = scalar_lea.sflag [#allocation4], 1
    %352 = vsyncpa %s351, 1

</llo_original>
